<compile_context>
chip_gen: v6e
topology: v6e:2x2x1
jax: 0.10.0
libtpu: 0.0.40
codegen_flags: <defaults>
</compile_context>

<pallas_src>
import functools
import math

import jax
import jax.numpy as jnp
from jax.experimental import pallas as pl
from jax.experimental.pallas import tpu as pltpu


def _mlp_kernel(num_layers, compute_dtype, x_ref, *refs):
    """Fused MLP. refs = (w0, b0, ..., w_{L-1}, b_{L-1}, out_ref).

    x_ref  : [col_tile, in_ch]   (native row-major rows of the input)
    w_i    : [out_i, in_i]       (PyTorch nn.Linear layout)
    b_i    : [out_i, 1]
    out_ref: [out_ch, col_tile]  (feature-major, lane-dense store)
    """
    out_ref = refs[-1]
    params = refs[:-1]

    h = None
    for i in range(num_layers):
        w = params[2 * i][...].astype(compute_dtype)
        b = params[2 * i + 1][...].astype(jnp.float32)  # [out_i, 1] broadcasts over lanes
        if i == 0:
            x = x_ref[...].astype(compute_dtype)
            # NT matmul: contract in_ch of both operands -> [out_0, col_tile].
            h = jax.lax.dot_general(
                w, x,
                dimension_numbers=(((1,), (1,)), ((), ())),
                preferred_element_type=jnp.float32) + b
        else:
            h = jnp.dot(w, h.astype(compute_dtype),
                        preferred_element_type=jnp.float32) + b
        if i < num_layers - 1:  # ReLU between hidden layers only
            h = jnp.maximum(h, 0.0)
    # norm_layer is None in the reference module -> identity.
    out_ref[...] = h.astype(out_ref.dtype)


def _round_up(x, m):
    return -(-x // m) * m


def _num_tensorcores():
    """Best-effort TensorCores-per-chip query (2 on v7x, 1 on v5e/v6e)."""
    try:
        info = pltpu.get_tpu_info()
        for attr in ("tensorcores_per_chip", "num_tensorcores", "num_cores",
                     "cores_per_chip"):
            v = getattr(info, attr, None)
            if isinstance(v, int) and v > 0:
                return v
    except Exception:
        pass
    try:
        v = getattr(jax.devices()[0], "num_cores", None)
        if isinstance(v, int) and v > 0:
            return v
    except Exception:
        pass
    return 1


def _vmem_capacity_bytes():
    try:
        cap = getattr(pltpu.get_tpu_info(), "vmem_capacity_bytes", None)
        if cap:
            return int(cap)
    except Exception:
        pass
    return 64 << 20  # conservative: v7x per-core physical VMEM


def _choose_col_tile(n, num_tensorcores, max_col_tile):
    """Lane-tile (over rows) selection.

    * single full tile whenever one block covers all rows (zero extra grid steps)
    * on dual-TensorCore parts (v7x) keep >= 2 grid steps for n >= 256 so both
      cores get work; on single-core parts extra steps are pure overhead.
    """
    max_col_tile = max(128, _round_up(max_col_tile, 128))
    if num_tensorcores >= 2 and n >= 256:
        half = _round_up(pl.cdiv(n, 2), 128)
        return min(max_col_tile, half)
    if n <= max_col_tile:
        return n  # block dim == full array dim is always legal
    return max_col_tile


def mlp_forward(x, weights, biases, *, max_col_tile=4096, compute_dtype=None,
                num_tensorcores=None, feature_major_output=False):
    """Run the fused MLP kernel.

    x:        [N, input_channels]           (native layout, no pre-transpose)
    weights:  list of [out_i, in_i]         (PyTorch nn.Linear layout)
    biases:   list of [out_i]
    returns:  [N, output_channels]  (or [output_channels, N] if
              feature_major_output=True, skipping one HBM transpose pass)
    compute_dtype: None/f32 (exact) or jnp.bfloat16 (halves x HBM bytes; caller
              owns the accuracy tolerance).
    """
    n, in_ch = x.shape
    num_layers = len(weights)
    out_ch = weights[-1].shape[0]
    if compute_dtype is None:
        compute_dtype = jnp.float32
    if num_tensorcores is None:
        num_tensorcores = _num_tensorcores()

    col_tile = _choose_col_tile(n, num_tensorcores, max_col_tile)
    num_tiles = pl.cdiv(n, col_tile)

    args = [x]
    param_bytes = 0
    for w, b in zip(weights, biases):
        b2 = b.reshape(-1, 1)
        args.append(w)
        args.append(b2)
        param_bytes += w.size * w.dtype.itemsize + b2.size * b2.dtype.itemsize

    # VMEM budget: single-buffered params + double-buffered activation tiles
    # + f32 intermediates + margin; capped at 80% of physical VMEM (headroom
    # for compiler-internal scratch, esp. on v7x's 64 MiB).
    itemsize = x.dtype.itemsize
    widest = max([in_ch] + [w.shape[0] for w in weights])
    act_bytes = 2 * (col_tile * in_ch + out_ch * col_tile) * itemsize
    interm_bytes = 4 * widest * col_tile * 4
    need = param_bytes + act_bytes + interm_bytes + (4 << 20)
    vmem_bytes = min(max(need, 32 << 20), int(0.8 * _vmem_capacity_bytes()))

    kernel = functools.partial(_mlp_kernel, num_layers, compute_dtype)

    def build_and_run(single_buffer_params):
        param_kwargs = {}
        if single_buffer_params:
            # Params never change across the grid -> no double buffering needed.
            param_kwargs = dict(pipeline_mode=pl.Buffered(1))
        in_specs = [pl.BlockSpec((col_tile, in_ch), lambda c: (c, 0))]
        for w, b in zip(weights, biases):
            in_specs.append(pl.BlockSpec(w.shape, lambda c: (0, 0), **param_kwargs))
            in_specs.append(
                pl.BlockSpec((w.shape[0], 1), lambda c: (0, 0), **param_kwargs))
        out_specs = pl.BlockSpec((out_ch, col_tile), lambda c: (0, c))
        call = pl.pallas_call(
            kernel,
            out_shape=jax.ShapeDtypeStruct((out_ch, n), x.dtype),
            grid=(num_tiles,),
            in_specs=in_specs,
            out_specs=out_specs,
            compiler_params=pltpu.CompilerParams(
                dimension_semantics=("parallel",),
                vmem_limit_bytes=vmem_bytes,
            ),
        )
        return call(*args)

    try:
        out_t = build_and_run(True)
    except Exception:
        # pipeline_mode=pl.Buffered(1) not supported by this jax version:
        # fall back to default double-buffered params (negligible at these sizes).
        out_t = build_and_run(False)

    if feature_major_output:
        return out_t  # [out_ch, N]: saves an extra HBM read+write pass
    return out_t.T    # PyTorch [N, out_ch] convention


def init_mlp_params(key, input_channels, hidden_channels, output_channels):
    """Deterministic init mimicking torch.nn.Linear.reset_parameters:
    weight, bias ~ U(-1/sqrt(fan_in), 1/sqrt(fan_in)); weights in [out, in]."""
    ic = [input_channels] + list(hidden_channels)
    oc = list(hidden_channels) + [output_channels]
    weights, biases = [], []
    for fan_in, fan_out in zip(ic, oc):
        key, kw, kb = jax.random.split(key, 3)
        bound = 1.0 / math.sqrt(fan_in)
        weights.append(
            jax.random.uniform(kw, (fan_out, fan_in), jnp.float32, -bound, bound))
        biases.append(
            jax.random.uniform(kb, (fan_out,), jnp.float32, -bound, bound))
    return weights, biases


def mlp_reference(x, weights, biases):
    """Pure-JAX reference matching the PyTorch forward (weights in [out, in])."""
    h = x
    num_layers = len(weights)
    for i, (w, b) in enumerate(zip(weights, biases)):
        h = h @ w.T + b
        if i < num_layers - 1:
            h = jnp.maximum(h, 0.0)
    return h


if __name__ == "__main__":
    key = jax.random.PRNGKey(0)

    # Module config: MLP(input_channels=16, hidden_channels=[32, 32], output_channels=8)
    input_channels = 16
    hidden_channels = [32, 32]
    output_channels = 8
    n = 256  # rows (e.g. graph nodes)

    key, kx, kp = jax.random.split(key, 3)
    x = jax.random.normal(kx, (n, input_channels), dtype=jnp.float32)
    weights, biases = init_mlp_params(kp, input_channels, hidden_channels,
                                      output_channels)

    out = mlp_forward(x, weights, biases)
    out = jax.block_until_ready(out)
    ref = mlp_reference(x, weights, biases)
    assert out.shape == (n, output_channels)
    assert jnp.allclose(out, ref, atol=1e-5, rtol=1e-5), "mismatch vs reference"

    # Ragged-N / multi-tile path (partial last block handled by Pallas masking).
    key, kx2 = jax.random.split(key)
    n2 = 200
    x2 = jax.random.normal(kx2, (n2, input_channels), dtype=jnp.float32)
    out2 = jax.block_until_ready(mlp_forward(x2, weights, biases, max_col_tile=128))
    ref2 = mlp_reference(x2, weights, biases)
    assert out2.shape == (n2, output_channels)
    assert jnp.allclose(out2, ref2, atol=1e-5, rtol=1e-5), "ragged-N mismatch"

    print("KERNEL_OK")
</pallas_src>

<mosaic_0001>
module attributes {stable_mosaic.version = 11 : i64} {
  func.func @_mlp_kernel(%arg0: i32, %arg1: memref<256x16xf32, #tpu.memory_space<vmem>>, %arg2: memref<32x16xf32, #tpu.memory_space<vmem>>, %arg3: memref<32x1xf32, #tpu.memory_space<vmem>>, %arg4: memref<32x32xf32, #tpu.memory_space<vmem>>, %arg5: memref<32x1xf32, #tpu.memory_space<vmem>>, %arg6: memref<8x32xf32, #tpu.memory_space<vmem>>, %arg7: memref<8x1xf32, #tpu.memory_space<vmem>>, %arg8: memref<8x256xf32, #tpu.memory_space<vmem>>) attributes {dimension_semantics = [#tpu.dimension_semantics<parallel>], iteration_bounds = array<i64: 1>, scalar_prefetch = 0 : i64, scratch_operands = 0 : i64, tpu.core_type = #tpu.core_type<tc>, window_params = [{transform_indices = @transform_0, window_bounds = array<i64: 256, 16>}, {pipeline_mode = #tpu.pipeline_mode<synchronous>, transform_indices = @transform_1, window_bounds = array<i64: 32, 16>}, {pipeline_mode = #tpu.pipeline_mode<synchronous>, transform_indices = @transform_2, window_bounds = array<i64: 32, 1>}, {pipeline_mode = #tpu.pipeline_mode<synchronous>, transform_indices = @transform_3, window_bounds = array<i64: 32, 32>}, {pipeline_mode = #tpu.pipeline_mode<synchronous>, transform_indices = @transform_4, window_bounds = array<i64: 32, 1>}, {pipeline_mode = #tpu.pipeline_mode<synchronous>, transform_indices = @transform_5, window_bounds = array<i64: 8, 32>}, {pipeline_mode = #tpu.pipeline_mode<synchronous>, transform_indices = @transform_6, window_bounds = array<i64: 8, 1>}, {transform_indices = @transform_7, window_bounds = array<i64: 8, 256>}]} {
    %c0 = arith.constant 0 : index
    %c0_0 = arith.constant 0 : index
    %0 = vector.load %arg2[%c0, %c0_0] : memref<32x16xf32, #tpu.memory_space<vmem>>, vector<32x16xf32>
    %c0_1 = arith.constant 0 : index
    %c0_2 = arith.constant 0 : index
    %1 = vector.load %arg3[%c0_1, %c0_2] : memref<32x1xf32, #tpu.memory_space<vmem>>, vector<32x1xf32>
    %c0_3 = arith.constant 0 : index
    %c0_4 = arith.constant 0 : index
    %2 = vector.load %arg1[%c0_3, %c0_4] : memref<256x16xf32, #tpu.memory_space<vmem>>, vector<256x16xf32>
    %cst = arith.constant dense<0.000000e+00> : vector<32x256xf32>
    %3 = tpu.matmul %0, %2, %cst {dimension_numbers = #tpu.dot_dimension_numbers<[1], [1], [0], [0], [0, 0, 1, 0], [], []>} : vector<32x16xf32>, vector<256x16xf32>, vector<32x256xf32> -> vector<32x256xf32>
    %4 = vector.broadcast %1 : vector<32x1xf32> to vector<32x256xf32>
    %5 = arith.addf %3, %4 : vector<32x256xf32>
    %cst_5 = arith.constant 0.000000e+00 : f32
    %6 = vector.broadcast %cst_5 : f32 to vector<32x256xf32>
    %7 = arith.maximumf %5, %6 : vector<32x256xf32>
    %c0_6 = arith.constant 0 : index
    %c0_7 = arith.constant 0 : index
    %8 = vector.load %arg4[%c0_6, %c0_7] : memref<32x32xf32, #tpu.memory_space<vmem>>, vector<32x32xf32>
    %c0_8 = arith.constant 0 : index
    %c0_9 = arith.constant 0 : index
    %9 = vector.load %arg5[%c0_8, %c0_9] : memref<32x1xf32, #tpu.memory_space<vmem>>, vector<32x1xf32>
    %cst_10 = arith.constant dense<0.000000e+00> : vector<32x256xf32>
    %10 = tpu.matmul %8, %7, %cst_10 {dimension_numbers = #tpu.dot_dimension_numbers<[1], [0], [0], [1], [0, 0, 1, 1], [], []>} : vector<32x32xf32>, vector<32x256xf32>, vector<32x256xf32> -> vector<32x256xf32>
    %11 = vector.broadcast %9 : vector<32x1xf32> to vector<32x256xf32>
    %12 = arith.addf %10, %11 : vector<32x256xf32>
    %cst_11 = arith.constant 0.000000e+00 : f32
    %13 = vector.broadcast %cst_11 : f32 to vector<32x256xf32>
    %14 = arith.maximumf %12, %13 : vector<32x256xf32>
    %c0_12 = arith.constant 0 : index
    %c0_13 = arith.constant 0 : index
    %15 = vector.load %arg6[%c0_12, %c0_13] : memref<8x32xf32, #tpu.memory_space<vmem>>, vector<8x32xf32>
    %c0_14 = arith.constant 0 : index
    %c0_15 = arith.constant 0 : index
    %16 = vector.load %arg7[%c0_14, %c0_15] : memref<8x1xf32, #tpu.memory_space<vmem>>, vector<8x1xf32>
    %cst_16 = arith.constant dense<0.000000e+00> : vector<8x256xf32>
    %17 = tpu.matmul %15, %14, %cst_16 {dimension_numbers = #tpu.dot_dimension_numbers<[1], [0], [0], [1], [0, 0, 1, 1], [], []>} : vector<8x32xf32>, vector<32x256xf32>, vector<8x256xf32> -> vector<8x256xf32>
    %18 = vector.broadcast %16 : vector<8x1xf32> to vector<8x256xf32>
    %19 = arith.addf %17, %18 : vector<8x256xf32>
    %c0_17 = arith.constant 0 : index
    %c0_18 = arith.constant 0 : index
    %20 = vector.load %arg8[%c0_17, %c0_18] : memref<8x256xf32, #tpu.memory_space<vmem>>, vector<8x256xf32>
    tpu.vector_store %arg8[%c0_17, %c0_18], %19 {strides = array<i32>} : memref<8x256xf32, #tpu.memory_space<vmem>>, vector<8x256xf32>,
    return
  }
  func.func @transform_0(%arg0: i32) -> (i32, i32) {
    %c0_i32 = arith.constant 0 : i32
    %c0_i32_0 = arith.constant 0 : i32
    return %arg0, %c0_i32 : i32, i32
  }
  func.func @transform_1(%arg0: i32) -> (i32, i32) {
    %c0_i32 = arith.constant 0 : i32
    %c0_i32_0 = arith.constant 0 : i32
    %c0_i32_1 = arith.constant 0 : i32
    return %c0_i32, %c0_i32_0 : i32, i32
  }
  func.func @transform_2(%arg0: i32) -> (i32, i32) {
    %c0_i32 = arith.constant 0 : i32
    %c0_i32_0 = arith.constant 0 : i32
    %c0_i32_1 = arith.constant 0 : i32
    return %c0_i32, %c0_i32_0 : i32, i32
  }
  func.func @transform_3(%arg0: i32) -> (i32, i32) {
    %c0_i32 = arith.constant 0 : i32
    %c0_i32_0 = arith.constant 0 : i32
    %c0_i32_1 = arith.constant 0 : i32
    return %c0_i32, %c0_i32_0 : i32, i32
  }
  func.func @transform_4(%arg0: i32) -> (i32, i32) {
    %c0_i32 = arith.constant 0 : i32
    %c0_i32_0 = arith.constant 0 : i32
    %c0_i32_1 = arith.constant 0 : i32
    return %c0_i32, %c0_i32_0 : i32, i32
  }
  func.func @transform_5(%arg0: i32) -> (i32, i32) {
    %c0_i32 = arith.constant 0 : i32
    %c0_i32_0 = arith.constant 0 : i32
    %c0_i32_1 = arith.constant 0 : i32
    return %c0_i32, %c0_i32_0 : i32, i32
  }
  func.func @transform_6(%arg0: i32) -> (i32, i32) {
    %c0_i32 = arith.constant 0 : i32
    %c0_i32_0 = arith.constant 0 : i32
    %c0_i32_1 = arith.constant 0 : i32
    return %c0_i32, %c0_i32_0 : i32, i32
  }
  func.func @transform_7(%arg0: i32) -> (i32, i32) {
    %c0_i32 = arith.constant 0 : i32
    %c0_i32_0 = arith.constant 0 : i32
    return %c0_i32, %arg0 : i32, i32
  }
}

module attributes {stable_mosaic.version = 11 : i64} {
  func.func @_mlp_kernel(%arg0: i32, %arg1: memref<256x16xf32, #tpu.memory_space<vmem>>, %arg2: memref<32x16xf32, #tpu.memory_space<vmem>>, %arg3: memref<32x1xf32, #tpu.memory_space<vmem>>, %arg4: memref<32x32xf32, #tpu.memory_space<vmem>>, %arg5: memref<32x1xf32, #tpu.memory_space<vmem>>, %arg6: memref<8x32xf32, #tpu.memory_space<vmem>>, %arg7: memref<8x1xf32, #tpu.memory_space<vmem>>, %arg8: memref<8x256xf32, #tpu.memory_space<vmem>>) attributes {dimension_semantics = [#tpu.dimension_semantics<parallel>], iteration_bounds = array<i64: 1>, scalar_prefetch = 0 : i64, scratch_operands = 0 : i64, tpu.core_type = #tpu.core_type<tc>, window_params = [{transform_indices = @transform_0, window_bounds = array<i64: 256, 16>}, {pipeline_mode = #tpu.pipeline_mode<synchronous>, transform_indices = @transform_1, window_bounds = array<i64: 32, 16>}, {pipeline_mode = #tpu.pipeline_mode<synchronous>, transform_indices = @transform_2, window_bounds = array<i64: 32, 1>}, {pipeline_mode = #tpu.pipeline_mode<synchronous>, transform_indices = @transform_3, window_bounds = array<i64: 32, 32>}, {pipeline_mode = #tpu.pipeline_mode<synchronous>, transform_indices = @transform_4, window_bounds = array<i64: 32, 1>}, {pipeline_mode = #tpu.pipeline_mode<synchronous>, transform_indices = @transform_5, window_bounds = array<i64: 8, 32>}, {pipeline_mode = #tpu.pipeline_mode<synchronous>, transform_indices = @transform_6, window_bounds = array<i64: 8, 1>}, {transform_indices = @transform_7, window_bounds = array<i64: 8, 256>}]} {
    %c0 = arith.constant 0 : index
    %c0_0 = arith.constant 0 : index
    %0 = vector.load %arg2[%c0, %c0_0] : memref<32x16xf32, #tpu.memory_space<vmem>>, vector<32x16xf32>
    %c0_1 = arith.constant 0 : index
    %c0_2 = arith.constant 0 : index
    %1 = vector.load %arg3[%c0_1, %c0_2] : memref<32x1xf32, #tpu.memory_space<vmem>>, vector<32x1xf32>
    %c0_3 = arith.constant 0 : index
    %c0_4 = arith.constant 0 : index
    %2 = vector.load %arg1[%c0_3, %c0_4] : memref<256x16xf32, #tpu.memory_space<vmem>>, vector<256x16xf32>
    %cst = arith.constant dense<0.000000e+00> : vector<32x256xf32>
    %3 = tpu.matmul %0, %2, %cst {dimension_numbers = #tpu.dot_dimension_numbers<[1], [1], [0], [0], [0, 0, 1, 0], [], []>} : vector<32x16xf32>, vector<256x16xf32>, vector<32x256xf32> -> vector<32x256xf32>
    %4 = vector.broadcast %1 : vector<32x1xf32> to vector<32x256xf32>
    %5 = arith.addf %3, %4 : vector<32x256xf32>
    %cst_5 = arith.constant 0.000000e+00 : f32
    %6 = vector.broadcast %cst_5 : f32 to vector<32x256xf32>
    %7 = arith.maximumf %5, %6 : vector<32x256xf32>
    %c0_6 = arith.constant 0 : index
    %c0_7 = arith.constant 0 : index
    %8 = vector.load %arg4[%c0_6, %c0_7] : memref<32x32xf32, #tpu.memory_space<vmem>>, vector<32x32xf32>
    %c0_8 = arith.constant 0 : index
    %c0_9 = arith.constant 0 : index
    %9 = vector.load %arg5[%c0_8, %c0_9] : memref<32x1xf32, #tpu.memory_space<vmem>>, vector<32x1xf32>
    %cst_10 = arith.constant dense<0.000000e+00> : vector<32x256xf32>
    %10 = tpu.matmul %8, %7, %cst_10 {dimension_numbers = #tpu.dot_dimension_numbers<[1], [0], [0], [1], [0, 0, 1, 1], [], []>} : vector<32x32xf32>, vector<32x256xf32>, vector<32x256xf32> -> vector<32x256xf32>
    %11 = vector.broadcast %9 : vector<32x1xf32> to vector<32x256xf32>
    %12 = arith.addf %10, %11 : vector<32x256xf32>
    %cst_11 = arith.constant 0.000000e+00 : f32
    %13 = vector.broadcast %cst_11 : f32 to vector<32x256xf32>
    %14 = arith.maximumf %12, %13 : vector<32x256xf32>
    %c0_12 = arith.constant 0 : index
    %c0_13 = arith.constant 0 : index
    %15 = vector.load %arg6[%c0_12, %c0_13] : memref<8x32xf32, #tpu.memory_space<vmem>>, vector<8x32xf32>
    %c0_14 = arith.constant 0 : index
    %c0_15 = arith.constant 0 : index
    %16 = vector.load %arg7[%c0_14, %c0_15] : memref<8x1xf32, #tpu.memory_space<vmem>>, vector<8x1xf32>
    %cst_16 = arith.constant dense<0.000000e+00> : vector<8x256xf32>
    %17 = tpu.matmul %15, %14, %cst_16 {dimension_numbers = #tpu.dot_dimension_numbers<[1], [0], [0], [1], [0, 0, 1, 1], [], []>} : vector<8x32xf32>, vector<32x256xf32>, vector<8x256xf32> -> vector<8x256xf32>
    %18 = vector.broadcast %16 : vector<8x1xf32> to vector<8x256xf32>
    %19 = arith.addf %17, %18 : vector<8x256xf32>
    %c0_17 = arith.constant 0 : index
    %c0_18 = arith.constant 0 : index
    %20 = vector.load %arg8[%c0_17, %c0_18] : memref<8x256xf32, #tpu.memory_space<vmem>>, vector<8x256xf32>
    tpu.vector_store %arg8[%c0_17, %c0_18], %19 {strides = array<i32>} : memref<8x256xf32, #tpu.memory_space<vmem>>, vector<8x256xf32>,
    return
  }
  func.func @transform_0(%arg0: i32) -> (i32, i32) {
    %c0_i32 = arith.constant 0 : i32
    %c0_i32_0 = arith.constant 0 : i32
    return %arg0, %c0_i32 : i32, i32
  }
  func.func @transform_1(%arg0: i32) -> (i32, i32) {
    %c0_i32 = arith.constant 0 : i32
    %c0_i32_0 = arith.constant 0 : i32
    %c0_i32_1 = arith.constant 0 : i32
    return %c0_i32, %c0_i32_0 : i32, i32
  }
  func.func @transform_2(%arg0: i32) -> (i32, i32) {
    %c0_i32 = arith.constant 0 : i32
    %c0_i32_0 = arith.constant 0 : i32
    %c0_i32_1 = arith.constant 0 : i32
    return %c0_i32, %c0_i32_0 : i32, i32
  }
  func.func @transform_3(%arg0: i32) -> (i32, i32) {
    %c0_i32 = arith.constant 0 : i32
    %c0_i32_0 = arith.constant 0 : i32
    %c0_i32_1 = arith.constant 0 : i32
    return %c0_i32, %c0_i32_0 : i32, i32
  }
  func.func @transform_4(%arg0: i32) -> (i32, i32) {
    %c0_i32 = arith.constant 0 : i32
    %c0_i32_0 = arith.constant 0 : i32
    %c0_i32_1 = arith.constant 0 : i32
    return %c0_i32, %c0_i32_0 : i32, i32
  }
  func.func @transform_5(%arg0: i32) -> (i32, i32) {
    %c0_i32 = arith.constant 0 : i32
    %c0_i32_0 = arith.constant 0 : i32
    %c0_i32_1 = arith.constant 0 : i32
    return %c0_i32, %c0_i32_0 : i32, i32
  }
  func.func @transform_6(%arg0: i32) -> (i32, i32) {
    %c0_i32 = arith.constant 0 : i32
    %c0_i32_0 = arith.constant 0 : i32
    %c0_i32_1 = arith.constant 0 : i32
    return %c0_i32, %c0_i32_0 : i32, i32
  }
  func.func @transform_7(%arg0: i32) -> (i32, i32) {
    %c0_i32 = arith.constant 0 : i32
    %c0_i32_0 = arith.constant 0 : i32
    return %c0_i32, %arg0 : i32, i32
  }
}

</mosaic_0001>

<llo_original>
// kernel: tpu_custom_call.1
$region0: #{tpu_custom_call.1}
  #allocation0 [shape = 'u32[]', space=smem, size = 0x4, offset = 0x4, fixed_abs, tag = 'smem constant byte address 0x4 - core index']
  #allocation1 [shape = 'u32[144,128]{1,0:T(1,128)}', space=vmem, size = 0x12000, scoped, tag = 'internal scratch']
  %s0 = inlined_call_operand.vmem [shape: f32[256,16], index: 0, kind: input, shape index: {}]
  %s1 = inlined_call_operand.vmem [shape: f32[32,16], index: 1, kind: input, shape index: {}]
  %s2 = inlined_call_operand.vmem [shape: f32[32,1], index: 2, kind: input, shape index: {}]
  %s3 = inlined_call_operand.vmem [shape: f32[32,32], index: 3, kind: input, shape index: {}]
  %s4 = inlined_call_operand.vmem [shape: f32[32,1], index: 4, kind: input, shape index: {}]
  %s5 = inlined_call_operand.vmem [shape: f32[8,32], index: 5, kind: input, shape index: {}]
  %s6 = inlined_call_operand.vmem [shape: f32[8,1], index: 6, kind: input, shape index: {}]
  %s7 = inlined_call_operand.hbm [shape: f32[8,256], index: 7, kind: output, shape index: {}]
  %s8 = sld [smem:[#allocation0]]
  $region38: #{tpu_custom_call.1} parent=0
    _
  %s10 = ssub.s32 1, %s8
  %s11 = scalar_select 0, %s10, %s8
  $region1: #{tpu_custom_call.1} parent=0
    #allocation2 [shape = 'u8[8192]{0}', space=vmem, size = 0x2000, scoped, tag = 'output window, operand 0, single buffered']
    #allocation3 [shape = 's32[1]{0}', space=sflag, size = 0x4, scoped, tag = 'scoped memory for tpu_custom_call.1']
    %12 = vsyncpa [#allocation3], 0
    // Predicated region
    $region2: #{tpu_custom_call.1} parent=1 // pred_check
      _
    $region3: #{tpu_custom_call.1} parent=1 // pred_check_branch
      %14 = sbr.rel (0) target = $region5
    $region4: #{tpu_custom_call.1} parent=1 // pred_region
      _
    $region5: #{tpu_custom_call.1} parent=1 // pred_fallthru
      _
    // Predicated region
    $region6: #{tpu_custom_call.1} parent=1 // pred_check
      _
    $region7: #{tpu_custom_call.1} parent=1 // pred_check_branch
      %16 = sbr.rel (0) target = $region9
    $region8: #{tpu_custom_call.1} parent=1 // pred_region
      _
    $region9: #{tpu_custom_call.1} parent=1 // pred_fallthru
      _
    // Predicated region
    $region10: #{tpu_custom_call.1} parent=1 // pred_check
      _
    $region11: #{tpu_custom_call.1} parent=1 // pred_check_branch
      %18 = sbr.rel (0) target = $region13
    $region12: #{tpu_custom_call.1} parent=1 // pred_region
      _
    $region13: #{tpu_custom_call.1} parent=1 // pred_fallthru
      _
    // Predicated region
    $region14: #{tpu_custom_call.1} parent=1 // pred_check
      _
    $region15: #{tpu_custom_call.1} parent=1 // pred_check_branch
      %20 = sbr.rel (0) target = $region17
    $region16: #{tpu_custom_call.1} parent=1 // pred_region
      _
    $region17: #{tpu_custom_call.1} parent=1 // pred_fallthru
      _
    // Predicated region
    $region18: #{tpu_custom_call.1} parent=1 // pred_check
      _
    $region19: #{tpu_custom_call.1} parent=1 // pred_check_branch
      %22 = sbr.rel (0) target = $region21
    $region20: #{tpu_custom_call.1} parent=1 // pred_region
      _
    $region21: #{tpu_custom_call.1} parent=1 // pred_fallthru
      _
    // Predicated region
    $region22: #{tpu_custom_call.1} parent=1 // pred_check
      _
    $region23: #{tpu_custom_call.1} parent=1 // pred_check_branch
      %24 = sbr.rel (0) target = $region25
    $region24: #{tpu_custom_call.1} parent=1 // pred_region
      _
    $region25: #{tpu_custom_call.1} parent=1 // pred_fallthru
      _
    // Predicated region
    $region26: #{tpu_custom_call.1} parent=1 // pred_check
      _
    $region27: #{tpu_custom_call.1} parent=1 // pred_check_branch
      %26 = sbr.rel (0) target = $region29
    $region28: #{tpu_custom_call.1} parent=1 // pred_region
      _
    $region29: #{tpu_custom_call.1} parent=1 // pred_fallthru
      _
    %v27 = vld [vmem:[%s1] sm:$0xff]
    %v28 = vld [vmem:[%s1 + $0x8] sm:$0xff]
    %v29 = vld [vmem:[%s1 + $0x10] sm:$0xff]
    %v30 = vld [vmem:[%s1 + $0x18] sm:$0xff]
    %v31 = vld [vmem:[%s2] sm:$0xff]
    %v32 = vld [vmem:[%s2 + $0x8] sm:$0xff]
    %v33 = vld [vmem:[%s2 + $0x10] sm:$0xff]
    %v34 = vld [vmem:[%s2 + $0x18] sm:$0xff]
    %v35 = vld [vmem:[%s0] sm:$0xff]
    %v36 = vld [vmem:[%s0 + $0x8] sm:$0xff]
    %v37 = vld [vmem:[%s0 + $0x10] sm:$0xff]
    %v38 = vld [vmem:[%s0 + $0x18] sm:$0xff]
    %v39 = vld [vmem:[%s0 + $0x20] sm:$0xff]
    %v40 = vld [vmem:[%s0 + $0x28] sm:$0xff]
    %v41 = vld [vmem:[%s0 + $0x30] sm:$0xff]
    %v42 = vld [vmem:[%s0 + $0x38] sm:$0xff]
    %v43 = vld [vmem:[%s0 + $0x40] sm:$0xff]
    %v44 = vld [vmem:[%s0 + $0x48] sm:$0xff]
    %v45 = vld [vmem:[%s0 + $0x50] sm:$0xff]
    %v46 = vld [vmem:[%s0 + $0x58] sm:$0xff]
    %v47 = vld [vmem:[%s0 + $0x60] sm:$0xff]
    %v48 = vld [vmem:[%s0 + $0x68] sm:$0xff]
    %v49 = vld [vmem:[%s0 + $0x70] sm:$0xff]
    %v50 = vld [vmem:[%s0 + $0x78] sm:$0xff]
    %v51 = vld [vmem:[%s0 + $0x80] sm:$0xff]
    %v52 = vld [vmem:[%s0 + $0x88] sm:$0xff]
    %v53 = vld [vmem:[%s0 + $0x90] sm:$0xff]
    %v54 = vld [vmem:[%s0 + $0x98] sm:$0xff]
    %v55 = vld [vmem:[%s0 + $0xa0] sm:$0xff]
    %v56 = vld [vmem:[%s0 + $0xa8] sm:$0xff]
    %v57 = vld [vmem:[%s0 + $0xb0] sm:$0xff]
    %v58 = vld [vmem:[%s0 + $0xb8] sm:$0xff]
    %v59 = vld [vmem:[%s0 + $0xc0] sm:$0xff]
    %v60 = vld [vmem:[%s0 + $0xc8] sm:$0xff]
    %v61 = vld [vmem:[%s0 + $0xd0] sm:$0xff]
    %v62 = vld [vmem:[%s0 + $0xd8] sm:$0xff]
    %v63 = vld [vmem:[%s0 + $0xe0] sm:$0xff]
    %v64 = vld [vmem:[%s0 + $0xe8] sm:$0xff]
    %v65 = vld [vmem:[%s0 + $0xf0] sm:$0xff]
    %v66 = vld [vmem:[%s0 + $0xf8] sm:$0xff]
    %68 = vset.pattern.permute.xlu0 0
    %69 = vperm.xlu0 %68, %v31
    %v70 = vpop.permute.xlu0 %69
    %73 = vset.pattern.permute.xlu0 0
    %74 = vperm.xlu0 %73, %v32
    %v75 = vpop.permute.xlu0 %74
    %78 = vset.pattern.permute.xlu0 0
    %79 = vperm.xlu0 %78, %v33
    %v80 = vpop.permute.xlu0 %79
    %83 = vset.pattern.permute.xlu0 0
    %84 = vperm.xlu0 %83, %v34
    %v85 = vpop.permute.xlu0 %84
    %vm87 = vcmask 130048
    %v89 = vsel %vm87, %v27, 0
    %v92 = vsel %vm87, %v28, 0
    %v95 = vsel %vm87, %v29, 0
    %v98 = vsel %vm87, %v30, 0
    %v101 = vsel %vm87, %v35, 0
    %v104 = vsel %vm87, %v36, 0
    %v107 = vsel %vm87, %v37, 0
    %v110 = vsel %vm87, %v38, 0
    %v113 = vsel %vm87, %v39, 0
    %v116 = vsel %vm87, %v40, 0
    %v119 = vsel %vm87, %v41, 0
    %v122 = vsel %vm87, %v42, 0
    %v125 = vsel %vm87, %v43, 0
    %v128 = vsel %vm87, %v44, 0
    %v131 = vsel %vm87, %v45, 0
    %v134 = vsel %vm87, %v46, 0
    %v137 = vsel %vm87, %v47, 0
    %v140 = vsel %vm87, %v48, 0
    %v143 = vsel %vm87, %v49, 0
    %v146 = vsel %vm87, %v50, 0
    %v149 = vsel %vm87, %v51, 0
    %v152 = vsel %vm87, %v52, 0
    %v155 = vsel %vm87, %v53, 0
    %v158 = vsel %vm87, %v54, 0
    %v161 = vsel %vm87, %v55, 0
    %v164 = vsel %vm87, %v56, 0
    %v167 = vsel %vm87, %v57, 0
    %v170 = vsel %vm87, %v58, 0
    %v173 = vsel %vm87, %v59, 0
    %v176 = vsel %vm87, %v60, 0
    %v179 = vsel %vm87, %v61, 0
    %v182 = vsel %vm87, %v62, 0
    %v185 = vsel %vm87, %v63, 0
    %v188 = vsel %vm87, %v64, 0
    %v191 = vsel %vm87, %v65, 0
    %v194 = vsel %vm87, %v66, 0
    %196 = vmatprep.subr.mxu0 0.0
    %197 = vmatpush1.xpose.msra.mxu0 %v146
    %198 = vmatprep.subr.mxu0 0.0
    %199 = vmatpush1.xpose.msra.mxu0 %v143
    %200 = vmatprep.subr.mxu0 0.0
    %201 = vmatpush1.xpose.msra.mxu0 %v140
    %202 = vmatprep.subr.mxu0 0.0
    %203 = vmatpush1.xpose.msra.mxu0 %v137
    %204 = vmatprep.subr.mxu0 0.0
    %205 = vmatpush1.xpose.msra.mxu0 %v134
    %206 = vmatprep.subr.mxu0 0.0
    %207 = vmatpush1.xpose.msra.mxu0 %v131
    %208 = vmatprep.subr.mxu0 0.0
    %209 = vmatpush1.xpose.msra.mxu0 %v128
    %210 = vmatprep.subr.mxu0 0.0
    %211 = vmatpush1.xpose.msra.mxu0 %v125
    %212 = vmatprep.subr.mxu0 0.0
    %213 = vmatpush1.xpose.msra.mxu0 %v122
    %214 = vmatprep.subr.mxu0 0.0
    %215 = vmatpush1.xpose.msra.mxu0 %v119
    %216 = vmatprep.subr.mxu0 0.0
    %217 = vmatpush1.xpose.msra.mxu0 %v116
    %218 = vmatprep.subr.mxu0 0.0
    %219 = vmatpush1.xpose.msra.mxu0 %v113
    %220 = vmatprep.subr.mxu0 0.0
    %221 = vmatpush1.xpose.msra.mxu0 %v110
    %222 = vmatprep.subr.mxu0 0.0
    %223 = vmatpush1.xpose.msra.mxu0 %v107
    %224 = vmatprep.subr.mxu0 0.0
    %225 = vmatpush1.xpose.msra.mxu0 %v104
    %226 = vmatprep.subr.mxu0 0.0
    %227 = vmatpush1.xpose.msra.mxu0 %v101
    %228 = vmatprep.subr.mxu0 0.0
    %229 = vmatpush2.xpose.msra.mxu0 %v194
    %230 = vmatprep.subr.mxu0 0.0
    %231 = vmatpush2.xpose.msra.mxu0 %v191
    %232 = vmatprep.subr.mxu0 0.0
    %233 = vmatpush2.xpose.msra.mxu0 %v188
    %234 = vmatprep.subr.mxu0 0.0
    %235 = vmatpush2.xpose.msra.mxu0 %v185
    %236 = vmatprep.subr.mxu0 0.0
    %237 = vmatpush2.xpose.msra.mxu0 %v182
    %238 = vmatprep.subr.mxu0 0.0
    %239 = vmatpush2.xpose.msra.mxu0 %v179
    %240 = vmatprep.subr.mxu0 0.0
    %241 = vmatpush2.xpose.msra.mxu0 %v176
    %242 = vmatprep.subr.mxu0 0.0
    %243 = vmatpush2.xpose.msra.mxu0 %v173
    %244 = vmatprep.subr.mxu0 0.0
    %245 = vmatpush2.xpose.msra.mxu0 %v170
    %246 = vmatprep.subr.mxu0 0.0
    %247 = vmatpush2.xpose.msra.mxu0 %v167
    %248 = vmatprep.subr.mxu0 0.0
    %249 = vmatpush2.xpose.msra.mxu0 %v164
    %250 = vmatprep.subr.mxu0 0.0
    %251 = vmatpush2.xpose.msra.mxu0 %v161
    %252 = vmatprep.subr.mxu0 0.0
    %253 = vmatpush2.xpose.msra.mxu0 %v158
    %254 = vmatprep.subr.mxu0 0.0
    %255 = vmatpush2.xpose.msra.mxu0 %v155
    %256 = vmatprep.subr.mxu0 0.0
    %257 = vmatpush2.xpose.msra.mxu0 %v152
    %258 = vmatprep.subr.mxu0 0.0
    %259 = vmatpush2.xpose.msra.mxu0 %v149
    %260 = vmatprep.mubr.f32.mxu0 0.0
    %261 = vmatmul.mubr.f32.gmra.mxu0 %v89
    %v262 = vpop.f32.mrf.mxu0
    %v263 = vadd.f32 %v70, %v262
    %v264 = vpop.f32.mrf.mxu0
    %v265 = vadd.f32 %v70, %v264
    %266 = vmatprep.mubr.f32.mxu0 0.0
    %267 = vmatmul.mubr.f32.gmra.mxu0 %v92
    %v268 = vpop.f32.mrf.mxu0
    %v269 = vadd.f32 %v75, %v268
    %v270 = vpop.f32.mrf.mxu0
    %v271 = vadd.f32 %v75, %v270
    %272 = vmatprep.mubr.f32.mxu0 0.0
    %273 = vmatmul.mubr.f32.gmra.mxu0 %v95
    %v274 = vpop.f32.mrf.mxu0
    %v275 = vadd.f32 %v80, %v274
    %v276 = vpop.f32.mrf.mxu0
    %v277 = vadd.f32 %v80, %v276
    %278 = vmatprep.mubr.f32.mxu0 0.0
    %279 = vmatmul.mubr.f32.gmra.mxu0 %v98
    %v280 = vpop.f32.mrf.mxu0
    %v281 = vadd.f32 %v85, %v280
    %v282 = vpop.f32.mrf.mxu0
    %v283 = vadd.f32 %v85, %v282
    %284 = vdwg.mxu0
    %v285 = vmax.f32 %v263, 0.0
    %v286 = vmax.f32 %v265, 0.0
    %v287 = vmax.f32 %v269, 0.0
    %v288 = vmax.f32 %v271, 0.0
    %v289 = vmax.f32 %v275, 0.0
    %v290 = vmax.f32 %v277, 0.0
    %v291 = vmax.f32 %v281, 0.0
    %v292 = vmax.f32 %v283, 0.0
    %v293 = vld [vmem:[%s3] sm:$0xff]
    %v294 = vld [vmem:[%s3 + $0x8] sm:$0xff]
    %v295 = vld [vmem:[%s3 + $0x10] sm:$0xff]
    %v296 = vld [vmem:[%s3 + $0x18] sm:$0xff]
    %v297 = vld [vmem:[%s4] sm:$0xff]
    %v298 = vld [vmem:[%s4 + $0x8] sm:$0xff]
    %v299 = vld [vmem:[%s4 + $0x10] sm:$0xff]
    %v300 = vld [vmem:[%s4 + $0x18] sm:$0xff]
    %302 = vset.pattern.permute.xlu0 0
    %303 = vperm.xlu0 %302, %v297
    %v304 = vpop.permute.xlu0 %303
    %307 = vset.pattern.permute.xlu0 0
    %308 = vperm.xlu0 %307, %v298
    %v309 = vpop.permute.xlu0 %308
    %312 = vset.pattern.permute.xlu0 0
    %313 = vperm.xlu0 %312, %v299
    %v314 = vpop.permute.xlu0 %313
    %317 = vset.pattern.permute.xlu0 0
    %318 = vperm.xlu0 %317, %v300
    %v319 = vpop.permute.xlu0 %318
    %vm321 = vcmask 261120
    %v323 = vsel %vm321, %v293, 0
    %v326 = vsel %vm321, %v294, 0
    %v329 = vsel %vm321, %v295, 0
    %v332 = vsel %vm321, %v296, 0
    %334 = vmatprep.subr.mxu0 0.0
    %335 = vmatpush1.msra.mxu0 0.0
    %336 = vmatprep.subr.mxu0 0.0
    %337 = vmatpush1.msra.mxu0 0.0
    %338 = vmatprep.subr.mxu0 0.0
    %339 = vmatpush1.msra.mxu0 0.0
    %340 = vmatprep.subr.mxu0 0.0
    %341 = vmatpush1.msra.mxu0 0.0
    %342 = vmatprep.subr.mxu0 0.0
    %343 = vmatpush1.msra.mxu0 0.0
    %344 = vmatprep.subr.mxu0 0.0
    %345 = vmatpush1.msra.mxu0 0.0
    %346 = vmatprep.subr.mxu0 0.0
    %347 = vmatpush1.msra.mxu0 0.0
    %348 = vmatprep.subr.mxu0 0.0
    %349 = vmatpush1.msra.mxu0 0.0
    %350 = vmatprep.subr.mxu0 0.0
    %351 = vmatpush1.msra.mxu0 0.0
    %352 = vmatprep.subr.mxu0 0.0
    %353 = vmatpush1.msra.mxu0 0.0
    %354 = vmatprep.subr.mxu0 0.0
    %355 = vmatpush1.msra.mxu0 0.0
    %356 = vmatprep.subr.mxu0 0.0
    %357 = vmatpush1.msra.mxu0 0.0
    %358 = vmatprep.subr.mxu0 %v292
    %359 = vmatpush1.msra.mxu0 %v291
    %360 = vmatprep.subr.mxu0 %v290
    %361 = vmatpush1.msra.mxu0 %v289
    %362 = vmatprep.subr.mxu0 %v288
    %363 = vmatpush1.msra.mxu0 %v287
    %364 = vmatprep.subr.mxu0 %v286
    %365 = vmatpush1.msra.mxu0 %v285
    %366 = vmatprep.subr.mxu0 0.0
    %367 = vmatpush2.msra.mxu0 0.0
    %368 = vmatprep.subr.mxu0 0.0
    %369 = vmatpush2.msra.mxu0 0.0
    %370 = vmatprep.subr.mxu0 0.0
    %371 = vmatpush2.msra.mxu0 0.0
    %372 = vmatprep.subr.mxu0 0.0
    %373 = vmatpush2.msra.mxu0 0.0
    %374 = vmatprep.subr.mxu0 0.0
    %375 = vmatpush2.msra.mxu0 0.0
    %376 = vmatprep.subr.mxu0 0.0
    %377 = vmatpush2.msra.mxu0 0.0
    %378 = vmatprep.subr.mxu0 0.0
    %379 = vmatpush2.msra.mxu0 0.0
    %380 = vmatprep.subr.mxu0 0.0
    %381 = vmatpush2.msra.mxu0 0.0
    %382 = vmatprep.subr.mxu0 0.0
    %383 = vmatpush2.msra.mxu0 0.0
    %384 = vmatprep.subr.mxu0 0.0
    %385 = vmatpush2.msra.mxu0 0.0
    %386 = vmatprep.subr.mxu0 0.0
    %387 = vmatpush2.msra.mxu0 0.0
    %388 = vmatprep.subr.mxu0 0.0
    %389 = vmatpush2.msra.mxu0 0.0
    %390 = vmatprep.subr.mxu0 0.0
    %391 = vmatpush2.msra.mxu0 0.0
    %392 = vmatprep.subr.mxu0 0.0
    %393 = vmatpush2.msra.mxu0 0.0
    %394 = vmatprep.subr.mxu0 0.0
    %395 = vmatpush2.msra.mxu0 0.0
    %396 = vmatprep.subr.mxu0 0.0
    %397 = vmatpush2.msra.mxu0 0.0
    %398 = vmatprep.mubr.f32.mxu0 0.0
    %399 = vmatmul.mubr.f32.gmra.mxu0 %v323
    %v400 = vpop.f32.mrf.mxu0
    %v401 = vadd.f32 %v304, %v400
    %v402 = vpop.f32.mrf.mxu0
    %v403 = vadd.f32 %v304, %v402
    %404 = vmatprep.mubr.f32.mxu0 0.0
    %405 = vmatmul.mubr.f32.gmra.mxu0 %v326
    %v406 = vpop.f32.mrf.mxu0
    %v407 = vadd.f32 %v309, %v406
    %v408 = vpop.f32.mrf.mxu0
    %v409 = vadd.f32 %v309, %v408
    %410 = vmatprep.mubr.f32.mxu0 0.0
    %411 = vmatmul.mubr.f32.gmra.mxu0 %v329
    %v412 = vpop.f32.mrf.mxu0
    %v413 = vadd.f32 %v314, %v412
    %v414 = vpop.f32.mrf.mxu0
    %v415 = vadd.f32 %v314, %v414
    %416 = vmatprep.mubr.f32.mxu0 0.0
    %417 = vmatmul.mubr.f32.gmra.mxu0 %v332
    %v418 = vpop.f32.mrf.mxu0
    %v419 = vadd.f32 %v319, %v418
    %v420 = vpop.f32.mrf.mxu0
    %v421 = vadd.f32 %v319, %v420
    %422 = vdwg.mxu0
    %v423 = vmax.f32 %v401, 0.0
    %v424 = vmax.f32 %v403, 0.0
    %v425 = vmax.f32 %v407, 0.0
    %v426 = vmax.f32 %v409, 0.0
    %v427 = vmax.f32 %v413, 0.0
    %v428 = vmax.f32 %v415, 0.0
    %v429 = vmax.f32 %v419, 0.0
    %v430 = vmax.f32 %v421, 0.0
    %v431 = vld [vmem:[%s5] sm:$0xff]
    %v432 = vld [vmem:[%s6] sm:$0xff]
    %434 = vset.pattern.permute.xlu0 0
    %435 = vperm.xlu0 %434, %v432
    %v436 = vpop.permute.xlu0 %435
    %v439 = vsel %vm321, %v431, 0
    %441 = vmatprep.subr.mxu0 0.0
    %442 = vmatpush1.msra.mxu0 0.0
    %443 = vmatprep.subr.mxu0 0.0
    %444 = vmatpush1.msra.mxu0 0.0
    %445 = vmatprep.subr.mxu0 0.0
    %446 = vmatpush1.msra.mxu0 0.0
    %447 = vmatprep.subr.mxu0 0.0
    %448 = vmatpush1.msra.mxu0 0.0
    %449 = vmatprep.subr.mxu0 0.0
    %450 = vmatpush1.msra.mxu0 0.0
    %451 = vmatprep.subr.mxu0 0.0
    %452 = vmatpush1.msra.mxu0 0.0
    %453 = vmatprep.subr.mxu0 0.0
    %454 = vmatpush1.msra.mxu0 0.0
    %455 = vmatprep.subr.mxu0 0.0
    %456 = vmatpush1.msra.mxu0 0.0
    %457 = vmatprep.subr.mxu0 0.0
    %458 = vmatpush1.msra.mxu0 0.0
    %459 = vmatprep.subr.mxu0 0.0
    %460 = vmatpush1.msra.mxu0 0.0
    %461 = vmatprep.subr.mxu0 0.0
    %462 = vmatpush1.msra.mxu0 0.0
    %463 = vmatprep.subr.mxu0 0.0
    %464 = vmatpush1.msra.mxu0 0.0
    %465 = vmatprep.subr.mxu0 %v430
    %466 = vmatpush1.msra.mxu0 %v429
    %467 = vmatprep.subr.mxu0 %v428
    %468 = vmatpush1.msra.mxu0 %v427
    %469 = vmatprep.subr.mxu0 %v426
    %470 = vmatpush1.msra.mxu0 %v425
    %471 = vmatprep.subr.mxu0 %v424
    %472 = vmatpush1.msra.mxu0 %v423
    %473 = vmatprep.subr.mxu0 0.0
    %474 = vmatpush2.msra.mxu0 0.0
    %475 = vmatprep.subr.mxu0 0.0
    %476 = vmatpush2.msra.mxu0 0.0
    %477 = vmatprep.subr.mxu0 0.0
    %478 = vmatpush2.msra.mxu0 0.0
    %479 = vmatprep.subr.mxu0 0.0
    %480 = vmatpush2.msra.mxu0 0.0
    %481 = vmatprep.subr.mxu0 0.0
    %482 = vmatpush2.msra.mxu0 0.0
    %483 = vmatprep.subr.mxu0 0.0
    %484 = vmatpush2.msra.mxu0 0.0
    %485 = vmatprep.subr.mxu0 0.0
    %486 = vmatpush2.msra.mxu0 0.0
    %487 = vmatprep.subr.mxu0 0.0
    %488 = vmatpush2.msra.mxu0 0.0
    %489 = vmatprep.subr.mxu0 0.0
    %490 = vmatpush2.msra.mxu0 0.0
    %491 = vmatprep.subr.mxu0 0.0
    %492 = vmatpush2.msra.mxu0 0.0
    %493 = vmatprep.subr.mxu0 0.0
    %494 = vmatpush2.msra.mxu0 0.0
    %495 = vmatprep.subr.mxu0 0.0
    %496 = vmatpush2.msra.mxu0 0.0
    %497 = vmatprep.subr.mxu0 0.0
    %498 = vmatpush2.msra.mxu0 0.0
    %499 = vmatprep.subr.mxu0 0.0
    %500 = vmatpush2.msra.mxu0 0.0
    %501 = vmatprep.subr.mxu0 0.0
    %502 = vmatpush2.msra.mxu0 0.0
    %503 = vmatprep.subr.mxu0 0.0
    %504 = vmatpush2.msra.mxu0 0.0
    %505 = vmatprep.mubr.f32.mxu0 0.0
    %506 = vmatmul.mubr.f32.gmra.mxu0 %v439
    %v507 = vpop.f32.mrf.mxu0
    %v508 = vadd.f32 %v436, %v507
    %v509 = vpop.f32.mrf.mxu0
    %v510 = vadd.f32 %v436, %v509
    %511 = vdwg.mxu0
    %512 = vst [vmem:[#allocation2] sm:$0xff] %v508
    %513 = vst [vmem:[#allocation2 + $0x8] sm:$0xff] %v510
    // Predicated region
    $region30: #{tpu_custom_call.1} parent=1 // pred_check
      _
    $region31: #{tpu_custom_call.1} parent=1 // pred_check_branch
      %515 = sbr.rel (0) target = $region33
    $region32: #{tpu_custom_call.1} parent=1 // pred_region
      %s517 = ssub.s32 256, 256
      %518 = vsyncadd [#allocation3], %s517
      %s520 = sshll.u32 [#allocation2], 4
      %s521 = int_to_ptr.vmem [resolvable:$true] %s520
      %523 = dma.vmem_to_hbm [thread:$0]  %s521, 256, %s7, [#allocation3]
    $region33: #{tpu_custom_call.1} parent=1 // pred_fallthru
      _
    // Predicated region
    $region34: #{tpu_custom_call.1} parent=1 // pred_check
      _
    $region35: #{tpu_custom_call.1} parent=1 // pred_check_branch
      %525 = sbr.rel (0) target = $region37
    $region36: #{tpu_custom_call.1} parent=1 // pred_region
      %526 = dma.done [#allocation3], 256
    $region37: #{tpu_custom_call.1} parent=1 // pred_fallthru
      _
    %527 = vsyncpa [#allocation3], 1

// kernel: tpu_custom_call.1
$region0: #{tpu_custom_call.1}
  #allocation0 [shape = 'u32[]', space=smem, size = 0x4, offset = 0x4, fixed_abs, tag = 'smem constant byte address 0x4 - core index']
  #allocation1 [shape = 'u32[144,128]{1,0:T(1,128)}', space=vmem, size = 0x12000, scoped, tag = 'internal scratch']
  %s0 = inlined_call_operand.vmem [shape: f32[256,16], index: 0, kind: input, shape index: {}]
  %s1 = inlined_call_operand.vmem [shape: f32[32,16], index: 1, kind: input, shape index: {}]
  %s2 = inlined_call_operand.vmem [shape: f32[32,1], index: 2, kind: input, shape index: {}]
  %s3 = inlined_call_operand.vmem [shape: f32[32,32], index: 3, kind: input, shape index: {}]
  %s4 = inlined_call_operand.vmem [shape: f32[32,1], index: 4, kind: input, shape index: {}]
  %s5 = inlined_call_operand.vmem [shape: f32[8,32], index: 5, kind: input, shape index: {}]
  %s6 = inlined_call_operand.vmem [shape: f32[8,1], index: 6, kind: input, shape index: {}]
  %s7 = inlined_call_operand.hbm [shape: f32[8,256], index: 7, kind: output, shape index: {}]
  %s8 = sld [smem:[#allocation0]]
  $region38: #{tpu_custom_call.1} parent=0
    _
  %s10 = ssub.s32 1, %s8
  %s11 = scalar_select 0, %s10, %s8
  $region1: #{tpu_custom_call.1} parent=0
    #allocation2 [shape = 'u8[8192]{0}', space=vmem, size = 0x2000, scoped, tag = 'output window, operand 0, single buffered']
    #allocation3 [shape = 's32[1]{0}', space=sflag, size = 0x4, scoped, tag = 'scoped memory for tpu_custom_call.1']
    %12 = vsyncpa [#allocation3], 0
    // Predicated region
    $region2: #{tpu_custom_call.1} parent=1 // pred_check
      _
    $region3: #{tpu_custom_call.1} parent=1 // pred_check_branch
      %14 = sbr.rel (0) target = $region5
    $region4: #{tpu_custom_call.1} parent=1 // pred_region
      _
    $region5: #{tpu_custom_call.1} parent=1 // pred_fallthru
      _
    // Predicated region
    $region6: #{tpu_custom_call.1} parent=1 // pred_check
      _
    $region7: #{tpu_custom_call.1} parent=1 // pred_check_branch
      %16 = sbr.rel (0) target = $region9
    $region8: #{tpu_custom_call.1} parent=1 // pred_region
      _
    $region9: #{tpu_custom_call.1} parent=1 // pred_fallthru
      _
    // Predicated region
    $region10: #{tpu_custom_call.1} parent=1 // pred_check
      _
    $region11: #{tpu_custom_call.1} parent=1 // pred_check_branch
      %18 = sbr.rel (0) target = $region13
    $region12: #{tpu_custom_call.1} parent=1 // pred_region
      _
    $region13: #{tpu_custom_call.1} parent=1 // pred_fallthru
      _
    // Predicated region
    $region14: #{tpu_custom_call.1} parent=1 // pred_check
      _
    $region15: #{tpu_custom_call.1} parent=1 // pred_check_branch
      %20 = sbr.rel (0) target = $region17
    $region16: #{tpu_custom_call.1} parent=1 // pred_region
      _
    $region17: #{tpu_custom_call.1} parent=1 // pred_fallthru
      _
    // Predicated region
    $region18: #{tpu_custom_call.1} parent=1 // pred_check
      _
    $region19: #{tpu_custom_call.1} parent=1 // pred_check_branch
      %22 = sbr.rel (0) target = $region21
    $region20: #{tpu_custom_call.1} parent=1 // pred_region
      _
    $region21: #{tpu_custom_call.1} parent=1 // pred_fallthru
      _
    // Predicated region
    $region22: #{tpu_custom_call.1} parent=1 // pred_check
      _
    $region23: #{tpu_custom_call.1} parent=1 // pred_check_branch
      %24 = sbr.rel (0) target = $region25
    $region24: #{tpu_custom_call.1} parent=1 // pred_region
      _
    $region25: #{tpu_custom_call.1} parent=1 // pred_fallthru
      _
    // Predicated region
    $region26: #{tpu_custom_call.1} parent=1 // pred_check
      _
    $region27: #{tpu_custom_call.1} parent=1 // pred_check_branch
      %26 = sbr.rel (0) target = $region29
    $region28: #{tpu_custom_call.1} parent=1 // pred_region
      _
    $region29: #{tpu_custom_call.1} parent=1 // pred_fallthru
      _
    %v27 = vld [vmem:[%s1] sm:$0xff]
    %v28 = vld [vmem:[%s1 + $0x8] sm:$0xff]
    %v29 = vld [vmem:[%s1 + $0x10] sm:$0xff]
    %v30 = vld [vmem:[%s1 + $0x18] sm:$0xff]
    %v31 = vld [vmem:[%s2] sm:$0xff]
    %v32 = vld [vmem:[%s2 + $0x8] sm:$0xff]
    %v33 = vld [vmem:[%s2 + $0x10] sm:$0xff]
    %v34 = vld [vmem:[%s2 + $0x18] sm:$0xff]
    %v35 = vld [vmem:[%s0] sm:$0xff]
    %v36 = vld [vmem:[%s0 + $0x8] sm:$0xff]
    %v37 = vld [vmem:[%s0 + $0x10] sm:$0xff]
    %v38 = vld [vmem:[%s0 + $0x18] sm:$0xff]
    %v39 = vld [vmem:[%s0 + $0x20] sm:$0xff]
    %v40 = vld [vmem:[%s0 + $0x28] sm:$0xff]
    %v41 = vld [vmem:[%s0 + $0x30] sm:$0xff]
    %v42 = vld [vmem:[%s0 + $0x38] sm:$0xff]
    %v43 = vld [vmem:[%s0 + $0x40] sm:$0xff]
    %v44 = vld [vmem:[%s0 + $0x48] sm:$0xff]
    %v45 = vld [vmem:[%s0 + $0x50] sm:$0xff]
    %v46 = vld [vmem:[%s0 + $0x58] sm:$0xff]
    %v47 = vld [vmem:[%s0 + $0x60] sm:$0xff]
    %v48 = vld [vmem:[%s0 + $0x68] sm:$0xff]
    %v49 = vld [vmem:[%s0 + $0x70] sm:$0xff]
    %v50 = vld [vmem:[%s0 + $0x78] sm:$0xff]
    %v51 = vld [vmem:[%s0 + $0x80] sm:$0xff]
    %v52 = vld [vmem:[%s0 + $0x88] sm:$0xff]
    %v53 = vld [vmem:[%s0 + $0x90] sm:$0xff]
    %v54 = vld [vmem:[%s0 + $0x98] sm:$0xff]
    %v55 = vld [vmem:[%s0 + $0xa0] sm:$0xff]
    %v56 = vld [vmem:[%s0 + $0xa8] sm:$0xff]
    %v57 = vld [vmem:[%s0 + $0xb0] sm:$0xff]
    %v58 = vld [vmem:[%s0 + $0xb8] sm:$0xff]
    %v59 = vld [vmem:[%s0 + $0xc0] sm:$0xff]
    %v60 = vld [vmem:[%s0 + $0xc8] sm:$0xff]
    %v61 = vld [vmem:[%s0 + $0xd0] sm:$0xff]
    %v62 = vld [vmem:[%s0 + $0xd8] sm:$0xff]
    %v63 = vld [vmem:[%s0 + $0xe0] sm:$0xff]
    %v64 = vld [vmem:[%s0 + $0xe8] sm:$0xff]
    %v65 = vld [vmem:[%s0 + $0xf0] sm:$0xff]
    %v66 = vld [vmem:[%s0 + $0xf8] sm:$0xff]
    %68 = vset.pattern.permute.xlu0 0
    %69 = vperm.xlu0 %68, %v31
    %v70 = vpop.permute.xlu0 %69
    %73 = vset.pattern.permute.xlu0 0
    %74 = vperm.xlu0 %73, %v32
    %v75 = vpop.permute.xlu0 %74
    %78 = vset.pattern.permute.xlu0 0
    %79 = vperm.xlu0 %78, %v33
    %v80 = vpop.permute.xlu0 %79
    %83 = vset.pattern.permute.xlu0 0
    %84 = vperm.xlu0 %83, %v34
    %v85 = vpop.permute.xlu0 %84
    %vm87 = vcmask 130048
    %v89 = vsel %vm87, %v27, 0
    %v92 = vsel %vm87, %v28, 0
    %v95 = vsel %vm87, %v29, 0
    %v98 = vsel %vm87, %v30, 0
    %v101 = vsel %vm87, %v35, 0
    %v104 = vsel %vm87, %v36, 0
    %v107 = vsel %vm87, %v37, 0
    %v110 = vsel %vm87, %v38, 0
    %v113 = vsel %vm87, %v39, 0
    %v116 = vsel %vm87, %v40, 0
    %v119 = vsel %vm87, %v41, 0
    %v122 = vsel %vm87, %v42, 0
    %v125 = vsel %vm87, %v43, 0
    %v128 = vsel %vm87, %v44, 0
    %v131 = vsel %vm87, %v45, 0
    %v134 = vsel %vm87, %v46, 0
    %v137 = vsel %vm87, %v47, 0
    %v140 = vsel %vm87, %v48, 0
    %v143 = vsel %vm87, %v49, 0
    %v146 = vsel %vm87, %v50, 0
    %v149 = vsel %vm87, %v51, 0
    %v152 = vsel %vm87, %v52, 0
    %v155 = vsel %vm87, %v53, 0
    %v158 = vsel %vm87, %v54, 0
    %v161 = vsel %vm87, %v55, 0
    %v164 = vsel %vm87, %v56, 0
    %v167 = vsel %vm87, %v57, 0
    %v170 = vsel %vm87, %v58, 0
    %v173 = vsel %vm87, %v59, 0
    %v176 = vsel %vm87, %v60, 0
    %v179 = vsel %vm87, %v61, 0
    %v182 = vsel %vm87, %v62, 0
    %v185 = vsel %vm87, %v63, 0
    %v188 = vsel %vm87, %v64, 0
    %v191 = vsel %vm87, %v65, 0
    %v194 = vsel %vm87, %v66, 0
    %196 = vmatprep.subr.mxu0 0.0
    %197 = vmatpush1.xpose.msra.mxu0 %v146
    %198 = vmatprep.subr.mxu0 0.0
    %199 = vmatpush1.xpose.msra.mxu0 %v143
    %200 = vmatprep.subr.mxu0 0.0
    %201 = vmatpush1.xpose.msra.mxu0 %v140
    %202 = vmatprep.subr.mxu0 0.0
    %203 = vmatpush1.xpose.msra.mxu0 %v137
    %204 = vmatprep.subr.mxu0 0.0
    %205 = vmatpush1.xpose.msra.mxu0 %v134
    %206 = vmatprep.subr.mxu0 0.0
    %207 = vmatpush1.xpose.msra.mxu0 %v131
    %208 = vmatprep.subr.mxu0 0.0
    %209 = vmatpush1.xpose.msra.mxu0 %v128
    %210 = vmatprep.subr.mxu0 0.0
    %211 = vmatpush1.xpose.msra.mxu0 %v125
    %212 = vmatprep.subr.mxu0 0.0
    %213 = vmatpush1.xpose.msra.mxu0 %v122
    %214 = vmatprep.subr.mxu0 0.0
    %215 = vmatpush1.xpose.msra.mxu0 %v119
    %216 = vmatprep.subr.mxu0 0.0
    %217 = vmatpush1.xpose.msra.mxu0 %v116
    %218 = vmatprep.subr.mxu0 0.0
    %219 = vmatpush1.xpose.msra.mxu0 %v113
    %220 = vmatprep.subr.mxu0 0.0
    %221 = vmatpush1.xpose.msra.mxu0 %v110
    %222 = vmatprep.subr.mxu0 0.0
    %223 = vmatpush1.xpose.msra.mxu0 %v107
    %224 = vmatprep.subr.mxu0 0.0
    %225 = vmatpush1.xpose.msra.mxu0 %v104
    %226 = vmatprep.subr.mxu0 0.0
    %227 = vmatpush1.xpose.msra.mxu0 %v101
    %228 = vmatprep.subr.mxu0 0.0
    %229 = vmatpush2.xpose.msra.mxu0 %v194
    %230 = vmatprep.subr.mxu0 0.0
    %231 = vmatpush2.xpose.msra.mxu0 %v191
    %232 = vmatprep.subr.mxu0 0.0
    %233 = vmatpush2.xpose.msra.mxu0 %v188
    %234 = vmatprep.subr.mxu0 0.0
    %235 = vmatpush2.xpose.msra.mxu0 %v185
    %236 = vmatprep.subr.mxu0 0.0
    %237 = vmatpush2.xpose.msra.mxu0 %v182
    %238 = vmatprep.subr.mxu0 0.0
    %239 = vmatpush2.xpose.msra.mxu0 %v179
    %240 = vmatprep.subr.mxu0 0.0
    %241 = vmatpush2.xpose.msra.mxu0 %v176
    %242 = vmatprep.subr.mxu0 0.0
    %243 = vmatpush2.xpose.msra.mxu0 %v173
    %244 = vmatprep.subr.mxu0 0.0
    %245 = vmatpush2.xpose.msra.mxu0 %v170
    %246 = vmatprep.subr.mxu0 0.0
    %247 = vmatpush2.xpose.msra.mxu0 %v167
    %248 = vmatprep.subr.mxu0 0.0
    %249 = vmatpush2.xpose.msra.mxu0 %v164
    %250 = vmatprep.subr.mxu0 0.0
    %251 = vmatpush2.xpose.msra.mxu0 %v161
    %252 = vmatprep.subr.mxu0 0.0
    %253 = vmatpush2.xpose.msra.mxu0 %v158
    %254 = vmatprep.subr.mxu0 0.0
    %255 = vmatpush2.xpose.msra.mxu0 %v155
    %256 = vmatprep.subr.mxu0 0.0
    %257 = vmatpush2.xpose.msra.mxu0 %v152
    %258 = vmatprep.subr.mxu0 0.0
    %259 = vmatpush2.xpose.msra.mxu0 %v149
    %260 = vmatprep.mubr.f32.mxu0 0.0
    %261 = vmatmul.mubr.f32.gmra.mxu0 %v89
    %v262 = vpop.f32.mrf.mxu0
    %v263 = vadd.f32 %v70, %v262
    %v264 = vpop.f32.mrf.mxu0
    %v265 = vadd.f32 %v70, %v264
    %266 = vmatprep.mubr.f32.mxu0 0.0
    %267 = vmatmul.mubr.f32.gmra.mxu0 %v92
    %v268 = vpop.f32.mrf.mxu0
    %v269 = vadd.f32 %v75, %v268
    %v270 = vpop.f32.mrf.mxu0
    %v271 = vadd.f32 %v75, %v270
    %272 = vmatprep.mubr.f32.mxu0 0.0
    %273 = vmatmul.mubr.f32.gmra.mxu0 %v95
    %v274 = vpop.f32.mrf.mxu0
    %v275 = vadd.f32 %v80, %v274
    %v276 = vpop.f32.mrf.mxu0
    %v277 = vadd.f32 %v80, %v276
    %278 = vmatprep.mubr.f32.mxu0 0.0
    %279 = vmatmul.mubr.f32.gmra.mxu0 %v98
    %v280 = vpop.f32.mrf.mxu0
    %v281 = vadd.f32 %v85, %v280
    %v282 = vpop.f32.mrf.mxu0
    %v283 = vadd.f32 %v85, %v282
    %284 = vdwg.mxu0
    %v285 = vmax.f32 %v263, 0.0
    %v286 = vmax.f32 %v265, 0.0
    %v287 = vmax.f32 %v269, 0.0
    %v288 = vmax.f32 %v271, 0.0
    %v289 = vmax.f32 %v275, 0.0
    %v290 = vmax.f32 %v277, 0.0
    %v291 = vmax.f32 %v281, 0.0
    %v292 = vmax.f32 %v283, 0.0
    %v293 = vld [vmem:[%s3] sm:$0xff]
    %v294 = vld [vmem:[%s3 + $0x8] sm:$0xff]
    %v295 = vld [vmem:[%s3 + $0x10] sm:$0xff]
    %v296 = vld [vmem:[%s3 + $0x18] sm:$0xff]
    %v297 = vld [vmem:[%s4] sm:$0xff]
    %v298 = vld [vmem:[%s4 + $0x8] sm:$0xff]
    %v299 = vld [vmem:[%s4 + $0x10] sm:$0xff]
    %v300 = vld [vmem:[%s4 + $0x18] sm:$0xff]
    %302 = vset.pattern.permute.xlu0 0
    %303 = vperm.xlu0 %302, %v297
    %v304 = vpop.permute.xlu0 %303
    %307 = vset.pattern.permute.xlu0 0
    %308 = vperm.xlu0 %307, %v298
    %v309 = vpop.permute.xlu0 %308
    %312 = vset.pattern.permute.xlu0 0
    %313 = vperm.xlu0 %312, %v299
    %v314 = vpop.permute.xlu0 %313
    %317 = vset.pattern.permute.xlu0 0
    %318 = vperm.xlu0 %317, %v300
    %v319 = vpop.permute.xlu0 %318
    %vm321 = vcmask 261120
    %v323 = vsel %vm321, %v293, 0
    %v326 = vsel %vm321, %v294, 0
    %v329 = vsel %vm321, %v295, 0
    %v332 = vsel %vm321, %v296, 0
    %334 = vmatprep.subr.mxu0 0.0
    %335 = vmatpush1.msra.mxu0 0.0
    %336 = vmatprep.subr.mxu0 0.0
    %337 = vmatpush1.msra.mxu0 0.0
    %338 = vmatprep.subr.mxu0 0.0
    %339 = vmatpush1.msra.mxu0 0.0
    %340 = vmatprep.subr.mxu0 0.0
    %341 = vmatpush1.msra.mxu0 0.0
    %342 = vmatprep.subr.mxu0 0.0
    %343 = vmatpush1.msra.mxu0 0.0
    %344 = vmatprep.subr.mxu0 0.0
    %345 = vmatpush1.msra.mxu0 0.0
    %346 = vmatprep.subr.mxu0 0.0
    %347 = vmatpush1.msra.mxu0 0.0
    %348 = vmatprep.subr.mxu0 0.0
    %349 = vmatpush1.msra.mxu0 0.0
    %350 = vmatprep.subr.mxu0 0.0
    %351 = vmatpush1.msra.mxu0 0.0
    %352 = vmatprep.subr.mxu0 0.0
    %353 = vmatpush1.msra.mxu0 0.0
    %354 = vmatprep.subr.mxu0 0.0
    %355 = vmatpush1.msra.mxu0 0.0
    %356 = vmatprep.subr.mxu0 0.0
    %357 = vmatpush1.msra.mxu0 0.0
    %358 = vmatprep.subr.mxu0 %v292
    %359 = vmatpush1.msra.mxu0 %v291
    %360 = vmatprep.subr.mxu0 %v290
    %361 = vmatpush1.msra.mxu0 %v289
    %362 = vmatprep.subr.mxu0 %v288
    %363 = vmatpush1.msra.mxu0 %v287
    %364 = vmatprep.subr.mxu0 %v286
    %365 = vmatpush1.msra.mxu0 %v285
    %366 = vmatprep.subr.mxu0 0.0
    %367 = vmatpush2.msra.mxu0 0.0
    %368 = vmatprep.subr.mxu0 0.0
    %369 = vmatpush2.msra.mxu0 0.0
    %370 = vmatprep.subr.mxu0 0.0
    %371 = vmatpush2.msra.mxu0 0.0
    %372 = vmatprep.subr.mxu0 0.0
    %373 = vmatpush2.msra.mxu0 0.0
    %374 = vmatprep.subr.mxu0 0.0
    %375 = vmatpush2.msra.mxu0 0.0
    %376 = vmatprep.subr.mxu0 0.0
    %377 = vmatpush2.msra.mxu0 0.0
    %378 = vmatprep.subr.mxu0 0.0
    %379 = vmatpush2.msra.mxu0 0.0
    %380 = vmatprep.subr.mxu0 0.0
    %381 = vmatpush2.msra.mxu0 0.0
    %382 = vmatprep.subr.mxu0 0.0
    %383 = vmatpush2.msra.mxu0 0.0
    %384 = vmatprep.subr.mxu0 0.0
    %385 = vmatpush2.msra.mxu0 0.0
    %386 = vmatprep.subr.mxu0 0.0
    %387 = vmatpush2.msra.mxu0 0.0
    %388 = vmatprep.subr.mxu0 0.0
    %389 = vmatpush2.msra.mxu0 0.0
    %390 = vmatprep.subr.mxu0 0.0
    %391 = vmatpush2.msra.mxu0 0.0
    %392 = vmatprep.subr.mxu0 0.0
    %393 = vmatpush2.msra.mxu0 0.0
    %394 = vmatprep.subr.mxu0 0.0
    %395 = vmatpush2.msra.mxu0 0.0
    %396 = vmatprep.subr.mxu0 0.0
    %397 = vmatpush2.msra.mxu0 0.0
    %398 = vmatprep.mubr.f32.mxu0 0.0
    %399 = vmatmul.mubr.f32.gmra.mxu0 %v323
    %v400 = vpop.f32.mrf.mxu0
    %v401 = vadd.f32 %v304, %v400
    %v402 = vpop.f32.mrf.mxu0
    %v403 = vadd.f32 %v304, %v402
    %404 = vmatprep.mubr.f32.mxu0 0.0
    %405 = vmatmul.mubr.f32.gmra.mxu0 %v326
    %v406 = vpop.f32.mrf.mxu0
    %v407 = vadd.f32 %v309, %v406
    %v408 = vpop.f32.mrf.mxu0
    %v409 = vadd.f32 %v309, %v408
    %410 = vmatprep.mubr.f32.mxu0 0.0
    %411 = vmatmul.mubr.f32.gmra.mxu0 %v329
    %v412 = vpop.f32.mrf.mxu0
    %v413 = vadd.f32 %v314, %v412
    %v414 = vpop.f32.mrf.mxu0
    %v415 = vadd.f32 %v314, %v414
    %416 = vmatprep.mubr.f32.mxu0 0.0
    %417 = vmatmul.mubr.f32.gmra.mxu0 %v332
    %v418 = vpop.f32.mrf.mxu0
    %v419 = vadd.f32 %v319, %v418
    %v420 = vpop.f32.mrf.mxu0
    %v421 = vadd.f32 %v319, %v420
    %422 = vdwg.mxu0
    %v423 = vmax.f32 %v401, 0.0
    %v424 = vmax.f32 %v403, 0.0
    %v425 = vmax.f32 %v407, 0.0
    %v426 = vmax.f32 %v409, 0.0
    %v427 = vmax.f32 %v413, 0.0
    %v428 = vmax.f32 %v415, 0.0
    %v429 = vmax.f32 %v419, 0.0
    %v430 = vmax.f32 %v421, 0.0
    %v431 = vld [vmem:[%s5] sm:$0xff]
    %v432 = vld [vmem:[%s6] sm:$0xff]
    %434 = vset.pattern.permute.xlu0 0
    %435 = vperm.xlu0 %434, %v432
    %v436 = vpop.permute.xlu0 %435
    %v439 = vsel %vm321, %v431, 0
    %441 = vmatprep.subr.mxu0 0.0
    %442 = vmatpush1.msra.mxu0 0.0
    %443 = vmatprep.subr.mxu0 0.0
    %444 = vmatpush1.msra.mxu0 0.0
    %445 = vmatprep.subr.mxu0 0.0
    %446 = vmatpush1.msra.mxu0 0.0
    %447 = vmatprep.subr.mxu0 0.0
    %448 = vmatpush1.msra.mxu0 0.0
    %449 = vmatprep.subr.mxu0 0.0
    %450 = vmatpush1.msra.mxu0 0.0
    %451 = vmatprep.subr.mxu0 0.0
    %452 = vmatpush1.msra.mxu0 0.0
    %453 = vmatprep.subr.mxu0 0.0
    %454 = vmatpush1.msra.mxu0 0.0
    %455 = vmatprep.subr.mxu0 0.0
    %456 = vmatpush1.msra.mxu0 0.0
    %457 = vmatprep.subr.mxu0 0.0
    %458 = vmatpush1.msra.mxu0 0.0
    %459 = vmatprep.subr.mxu0 0.0
    %460 = vmatpush1.msra.mxu0 0.0
    %461 = vmatprep.subr.mxu0 0.0
    %462 = vmatpush1.msra.mxu0 0.0
    %463 = vmatprep.subr.mxu0 0.0
    %464 = vmatpush1.msra.mxu0 0.0
    %465 = vmatprep.subr.mxu0 %v430
    %466 = vmatpush1.msra.mxu0 %v429
    %467 = vmatprep.subr.mxu0 %v428
    %468 = vmatpush1.msra.mxu0 %v427
    %469 = vmatprep.subr.mxu0 %v426
    %470 = vmatpush1.msra.mxu0 %v425
    %471 = vmatprep.subr.mxu0 %v424
    %472 = vmatpush1.msra.mxu0 %v423
    %473 = vmatprep.subr.mxu0 0.0
    %474 = vmatpush2.msra.mxu0 0.0
    %475 = vmatprep.subr.mxu0 0.0
    %476 = vmatpush2.msra.mxu0 0.0
    %477 = vmatprep.subr.mxu0 0.0
    %478 = vmatpush2.msra.mxu0 0.0
    %479 = vmatprep.subr.mxu0 0.0
    %480 = vmatpush2.msra.mxu0 0.0
    %481 = vmatprep.subr.mxu0 0.0
    %482 = vmatpush2.msra.mxu0 0.0
    %483 = vmatprep.subr.mxu0 0.0
    %484 = vmatpush2.msra.mxu0 0.0
    %485 = vmatprep.subr.mxu0 0.0
    %486 = vmatpush2.msra.mxu0 0.0
    %487 = vmatprep.subr.mxu0 0.0
    %488 = vmatpush2.msra.mxu0 0.0
    %489 = vmatprep.subr.mxu0 0.0
    %490 = vmatpush2.msra.mxu0 0.0
    %491 = vmatprep.subr.mxu0 0.0
    %492 = vmatpush2.msra.mxu0 0.0
    %493 = vmatprep.subr.mxu0 0.0
    %494 = vmatpush2.msra.mxu0 0.0
    %495 = vmatprep.subr.mxu0 0.0
    %496 = vmatpush2.msra.mxu0 0.0
    %497 = vmatprep.subr.mxu0 0.0
    %498 = vmatpush2.msra.mxu0 0.0
    %499 = vmatprep.subr.mxu0 0.0
    %500 = vmatpush2.msra.mxu0 0.0
    %501 = vmatprep.subr.mxu0 0.0
    %502 = vmatpush2.msra.mxu0 0.0
    %503 = vmatprep.subr.mxu0 0.0
    %504 = vmatpush2.msra.mxu0 0.0
    %505 = vmatprep.mubr.f32.mxu0 0.0
    %506 = vmatmul.mubr.f32.gmra.mxu0 %v439
    %v507 = vpop.f32.mrf.mxu0
    %v508 = vadd.f32 %v436, %v507
    %v509 = vpop.f32.mrf.mxu0
    %v510 = vadd.f32 %v436, %v509
    %511 = vdwg.mxu0
    %512 = vst [vmem:[#allocation2] sm:$0xff] %v508
    %513 = vst [vmem:[#allocation2 + $0x8] sm:$0xff] %v510
    // Predicated region
    $region30: #{tpu_custom_call.1} parent=1 // pred_check
      _
    $region31: #{tpu_custom_call.1} parent=1 // pred_check_branch
      %515 = sbr.rel (0) target = $region33
    $region32: #{tpu_custom_call.1} parent=1 // pred_region
      %s517 = ssub.s32 256, 256
      %518 = vsyncadd [#allocation3], %s517
      %s520 = sshll.u32 [#allocation2], 4
      %s521 = int_to_ptr.vmem [resolvable:$true] %s520
      %523 = dma.vmem_to_hbm [thread:$0]  %s521, 256, %s7, [#allocation3]
    $region33: #{tpu_custom_call.1} parent=1 // pred_fallthru
      _
    // Predicated region
    $region34: #{tpu_custom_call.1} parent=1 // pred_check
      _
    $region35: #{tpu_custom_call.1} parent=1 // pred_check_branch
      %525 = sbr.rel (0) target = $region37
    $region36: #{tpu_custom_call.1} parent=1 // pred_region
      %526 = dma.done [#allocation3], 256
    $region37: #{tpu_custom_call.1} parent=1 // pred_fallthru
      _
    %527 = vsyncpa [#allocation3], 1

</llo_original>
